<compile_context>
chip_gen: v7x
topology: tpu7x:2x2x1
jax: 0.10.0
libtpu: 0.0.40
codegen_flags: <defaults>
</compile_context>

<pallas_src>
import math

import jax
import jax.numpy as jnp
from jax.experimental import pallas as pl
from jax.experimental.pallas import tpu as pltpu

_LANE = 128
_LW_CAP = 4096                          # cap lane width (review: keep blocks sane)
_BLOCK_BYTES_TARGET = 4 * 1024 * 1024   # ~4 MiB per x block (v6e/v7x sweet spot)
_TINY_BYTES = 128 * 1024                # below this, plain jnp is faster


def _scale_shift_kernel(x_ref, scale_ref, shift_ref, o_ref):
    # y = x * scale + shift ; scale/shift are (1, LW) f32 residents,
    # broadcast over rows (hidden under DMA on all generations).
    x = x_ref[...].astype(jnp.float32)
    o_ref[...] = (x * scale_ref[...] + shift_ref[...]).astype(o_ref.dtype)


def _lcm(a, b):
    return a * b // math.gcd(a, b)


def _sublane_multiple(dtype):
    itemsize = jnp.dtype(dtype).itemsize
    return 8 * max(1, 4 // itemsize)    # f32: 8, bf16: 16, int8/fp8: 32


def _round_up(x, m):
    return -(-x // m) * m


def _round_down(x, m):
    return (x // m) * m


def _pallas_scale_shift(x, scale, shift):
    """y = x * scale + shift, scale/shift broadcast over the last axis of x."""
    orig_shape = x.shape
    dtype = x.dtype
    F = x.shape[-1]
    N = x.size
    itemsize = jnp.dtype(dtype).itemsize

    scale = scale.astype(jnp.float32).reshape(F)
    shift = shift.astype(jnp.float32).reshape(F)

    # --- tiny-input fast path: launch + layout overhead dwarfs the work. ---
    if N * itemsize <= _TINY_BYTES:
        y = x.astype(jnp.float32) * scale + shift
        return y.astype(dtype)

    # --- layout selection: never pad, never re-stream the tensor. ---
    base = _lcm(F, _LANE)
    LW = 0
    if base <= _LW_CAP and N % base == 0:
        # Lane-dense path: largest multiple of base <= cap that divides N,
        # so stores are full-width (unmasked vst) and the view is free.
        for m in range(_LW_CAP // base, 0, -1):
            if N % (m * base) == 0:
                LW = m * base
                break
    if LW == 0:
        # Fallback: natural (rows, F) view; F is the full last dim so the
        # (8,128) constraint is satisfied, ragged last block is masked by
        # Pallas.  Stores may be masked if F % 128 != 0, but there is no
        # extra HBM pass.
        LW = F
    R = N // LW
    x2 = x.reshape(R, LW)               # free reshape, no data movement

    reps = LW // F
    scale_row = jnp.tile(scale.reshape(1, F), (1, reps))
    shift_row = jnp.tile(shift.reshape(1, F), (1, reps))

    # --- row tile: ~4 MiB blocks, sublane-aligned, >= 2 blocks when possible
    #     so v7x's two TensorCores both get work via the parallel grid axis. ---
    sub = _sublane_multiple(dtype)
    rt = max(sub, _round_down(_BLOCK_BYTES_TARGET // (LW * itemsize), sub))
    if rt >= R:
        if R > 2 * sub:
            rt = _round_up(-(-R // 2), sub)   # split into 2 balanced blocks
        else:
            rt = R                            # single full-extent block
    grid = (-(-R // rt),)                     # cdiv; ragged last block is OK

    out = pl.pallas_call(
        _scale_shift_kernel,
        out_shape=jax.ShapeDtypeStruct((R, LW), dtype),
        grid_spec=pltpu.PrefetchScalarGridSpec(
            num_scalar_prefetch=0,
            grid=grid,
            in_specs=[
                pl.BlockSpec((rt, LW), lambda i: (i, 0)),   # x tile
                pl.BlockSpec((1, LW), lambda i: (0, 0)),    # scale (resident)
                pl.BlockSpec((1, LW), lambda i: (0, 0)),    # shift (resident)
            ],
            out_specs=pl.BlockSpec((rt, LW), lambda i: (i, 0)),
        ),
        compiler_params=pltpu.CompilerParams(
            dimension_semantics=("parallel",),
            vmem_limit_bytes=32 * 1024 * 1024,   # load-bearing on v5e (default 16 MiB)
        ),
    )(x2, scale_row, shift_row)

    return out.reshape(orig_shape)


def scaler_forward(x, mean, std):
    """(x - mean) / std, mean/std broadcast over the last axis."""
    # Matches the PyTorch module: no eps guard on std == 0 (same semantics).
    std_f32 = std.astype(jnp.float32)
    mean_f32 = mean.astype(jnp.float32)
    scale = 1.0 / std_f32               # exact reciprocal, computed once (O(F))
    shift = -mean_f32 * scale
    return _pallas_scale_shift(x, scale, shift)


def scaler_inv_forward(x, mean, std):
    """x * std + mean, mean/std broadcast over the last axis."""
    return _pallas_scale_shift(x, std.astype(jnp.float32), mean.astype(jnp.float32))


if __name__ == "__main__":
    key = jax.random.PRNGKey(0)
    keys = jax.random.split(key, 12)

    def check(x, mean, std):
        y = jax.block_until_ready(scaler_forward(x, mean, std))
        y_ref = (x - mean) / std
        assert jnp.allclose(y, y_ref, atol=1e-5, rtol=1e-5)
        x_rec = jax.block_until_ready(scaler_inv_forward(y, mean, std))
        assert jnp.allclose(x_rec, x, atol=1e-4, rtol=1e-5)

    def make_case(kx, km, ks, shape):
        F = shape[-1]
        x = jax.random.normal(kx, shape, dtype=jnp.float32)
        mean = jax.random.normal(km, (F,), dtype=jnp.float32)
        std = jnp.abs(jax.random.normal(ks, (F,), dtype=jnp.float32)) + 0.5
        return x, mean, std

    # 1) Small case consistent with the module (x[B,S,F]) -> tiny fast path.
    check(*make_case(keys[0], keys[1], keys[2], (2, 8, 32)))

    # 2) Lane-dense Pallas path (lcm(96,128)=384 divides N), 2 parallel blocks.
    check(*make_case(keys[3], keys[4], keys[5], (16, 64, 96)))

    # 3) Awkward F (lcm(250,128) > cap) -> natural (rows, F) fallback layout.
    check(*make_case(keys[6], keys[7], keys[8], (4, 64, 250)))

    # 4) Non-divisible row count -> ragged last block masked by Pallas.
    check(*make_case(keys[9], keys[10], keys[11], (5, 173, 96)))

    print("KERNEL_OK")
</pallas_src>

<mosaic_0001>
module attributes {stable_mosaic.version = 11 : i64} {
  func.func @_scale_shift_kernel(%arg0: i32, %arg1: memref<16x3072xf32, #tpu.memory_space<vmem>>, %arg2: memref<1x3072xf32, #tpu.memory_space<vmem>>, %arg3: memref<1x3072xf32, #tpu.memory_space<vmem>>, %arg4: memref<16x3072xf32, #tpu.memory_space<vmem>>) attributes {dimension_semantics = [#tpu.dimension_semantics<parallel>], iteration_bounds = array<i64: 2>, scalar_prefetch = 0 : i64, scratch_operands = 0 : i64, tpu.core_type = #tpu.core_type<tc>, window_params = [{transform_indices = @transform_0, window_bounds = array<i64: 16, 3072>}, {pipeline_mode = #tpu.pipeline_mode<synchronous>, transform_indices = @transform_1, window_bounds = array<i64: 1, 3072>}, {pipeline_mode = #tpu.pipeline_mode<synchronous>, transform_indices = @transform_2, window_bounds = array<i64: 1, 3072>}, {transform_indices = @transform_3, window_bounds = array<i64: 16, 3072>}]} {
    %c0 = arith.constant 0 : index
    %c0_0 = arith.constant 0 : index
    %0 = vector.load %arg1[%c0, %c0_0] : memref<16x3072xf32, #tpu.memory_space<vmem>>, vector<16x3072xf32>
    %c0_1 = arith.constant 0 : index
    %c0_2 = arith.constant 0 : index
    %1 = vector.load %arg2[%c0_1, %c0_2] : memref<1x3072xf32, #tpu.memory_space<vmem>>, vector<1x3072xf32>
    %2 = vector.broadcast %1 : vector<1x3072xf32> to vector<16x3072xf32>
    %3 = arith.mulf %0, %2 : vector<16x3072xf32>
    %c0_3 = arith.constant 0 : index
    %c0_4 = arith.constant 0 : index
    %4 = vector.load %arg3[%c0_3, %c0_4] : memref<1x3072xf32, #tpu.memory_space<vmem>>, vector<1x3072xf32>
    %5 = vector.broadcast %4 : vector<1x3072xf32> to vector<16x3072xf32>
    %6 = arith.addf %3, %5 : vector<16x3072xf32>
    %c0_5 = arith.constant 0 : index
    %c0_6 = arith.constant 0 : index
    %7 = vector.load %arg4[%c0_5, %c0_6] : memref<16x3072xf32, #tpu.memory_space<vmem>>, vector<16x3072xf32>
    tpu.vector_store %arg4[%c0_5, %c0_6], %6 {strides = array<i32>} : memref<16x3072xf32, #tpu.memory_space<vmem>>, vector<16x3072xf32>,
    return
  }
  func.func @transform_0(%arg0: i32) -> (i32, i32) {
    %c0_i32 = arith.constant 0 : i32
    %c0_i32_0 = arith.constant 0 : i32
    return %arg0, %c0_i32 : i32, i32
  }
  func.func @transform_1(%arg0: i32) -> (i32, i32) {
    %c0_i32 = arith.constant 0 : i32
    %c0_i32_0 = arith.constant 0 : i32
    %c0_i32_1 = arith.constant 0 : i32
    return %c0_i32, %c0_i32_0 : i32, i32
  }
  func.func @transform_2(%arg0: i32) -> (i32, i32) {
    %c0_i32 = arith.constant 0 : i32
    %c0_i32_0 = arith.constant 0 : i32
    %c0_i32_1 = arith.constant 0 : i32
    return %c0_i32, %c0_i32_0 : i32, i32
  }
  func.func @transform_3(%arg0: i32) -> (i32, i32) {
    %c0_i32 = arith.constant 0 : i32
    %c0_i32_0 = arith.constant 0 : i32
    return %arg0, %c0_i32 : i32, i32
  }
}

</mosaic_0001>

<llo_original>
// kernel: tpu_custom_call.1
$region0: #{tpu_custom_call.1}
  #allocation0 [shape = 'u32[]', space=smem, size = 0x4, offset = 0x4, fixed_abs, tag = 'smem constant byte address 0x4 - core index']
  #allocation1 [shape = 'u32[144,128]{1,0:T(1,128)}', space=vmem, size = 0x12000, scoped, tag = 'internal scratch']
  %s0 = inlined_call_operand.hbm [shape: f32[32,3072], index: 0, kind: input, shape index: {}]
  %s1 = inlined_call_operand.hbm [shape: f32[1,3072], index: 1, kind: input, shape index: {}]
  %s2 = inlined_call_operand.hbm [shape: f32[1,3072], index: 2, kind: input, shape index: {}]
  %s3 = inlined_call_operand.hbm [shape: f32[32,3072], index: 3, kind: output, shape index: {}]
  %s4 = sld [smem:[#allocation0]]
  $region57: #{tpu_custom_call.1} parent=0
    _
  %s6 = ssub.s32 1, %s4
  %s7 = scalar_select 0, %s6, %s4
  $region1: #{tpu_custom_call.1} parent=0
    #allocation2 [shape = 'u8[393216]{0}', space=vmem, size = 0x60000, scoped, tag = 'input window, operand 0']
    #allocation3 [shape = 's32[2]{0}', space=sflag, size = 0x8, scoped, tag = 'scoped memory for tpu_custom_call.1']
    #allocation4 [shape = 's32[2]{0}', space=sflag, size = 0x8, scoped, tag = 'scoped memory for tpu_custom_call.1']
    #allocation5 [shape = 'u8[12288]{0}', space=vmem, size = 0x3000, scoped, tag = 'input window, operand 1, single buffered']
    #allocation6 [shape = 's32[1]{0}', space=sflag, size = 0x4, scoped, tag = 'scoped memory for tpu_custom_call.1']
    #allocation7 [shape = 'u8[12288]{0}', space=vmem, size = 0x3000, scoped, tag = 'input window, operand 2, single buffered']
    #allocation8 [shape = 'u8[393216]{0}', space=vmem, size = 0x60000, scoped, tag = 'output window, operand 0']
    %8 = vsyncpa [#allocation3], 0
    %s9 = scalar_lea.sflag [#allocation3], 1
    %10 = vsyncpa %s9, 0
    %11 = vsyncpa [#allocation6], 0
    %12 = vsyncpa [#allocation4], 0
    %s13 = scalar_lea.sflag [#allocation4], 1
    %14 = vsyncpa %s13, 0
    loop: start=0, step=1, limit=4
    $region2: #{tpu_custom_call.1} parent=1 // loop_pre_header
      _
    $region3: #{tpu_custom_call.1} parent=1 // loop_header
      %s16 = sphi 0, %s20
      %p17 = scmp.ge.s32.totalorder %s16, 4
      %s26 = sphi 0, %s28
      %s29 = sphi 0, %s26
      %s30 = sphi 0, %s29
      %s46 = sphi 0, %s30
      %s50 = sphi 0, %s50
      %s52 = sphi 0, %s50
      %s53 = sphi 0, %s52
      %s67 = sphi 0, %s53
      %s71 = sphi 0, %s71
      %s73 = sphi 0, %s71
      %s74 = sphi 0, %s73
      %s88 = sphi 0, %s74
      %s94 = sphi 0, %s96
      %s97 = sphi 0, %s94
      %s98 = sphi 0, %s97
      %s114 = sphi 0, %s98
    $region4: #{tpu_custom_call.1} parent=1 // loop_header_branch
      %19 = sbr.rel (%p17) target = $region8
    $region5: #{tpu_custom_call.1} parent=1 // loop_body
      %s21 = ssub.s32 %s16, 1
      %s22 = ssub.s32 %s16, 2
      %s23 = sadd.s32 %s16, 1
      %s24 = ssub.s32 %s16, %s23
      %p25 = scmp.eq.s32.totalorder %s24, 0
      %s27 = sadd.s32 %s26, 1
      %s28 = scalar_select %p25, %s26, %s27
      %p31 = pneg %p25
      %p32 = scmp.eq.s32.totalorder %s16, 1
      %p33 = por %p31, %p32
      %p34 = scmp.ne.s32.totalorder %s26, %s29
      %p35 = scmp.eq.s32.totalorder %s16, 0
      %p36 = por %p34, %p35
      %p37 = scmp.ne.s32.totalorder %s26, %s29
      %p38 = scmp.eq.s32.totalorder %s21, 1
      %p39 = por %p37, %p38
      %p40 = scmp.ne.s32.totalorder %s29, %s30
      %p41 = scmp.eq.s32.totalorder %s21, 0
      %p42 = por %p40, %p41
      %p43 = scmp.ne.s32.totalorder %s29, %s30
      %p44 = scmp.eq.s32.totalorder %s22, 1
      %p45 = por %p43, %p44
      %p47 = scmp.ne.s32.totalorder %s30, %s46
      %p48 = scmp.eq.s32.totalorder %s22, 0
      %p49 = por %p47, %p48
      %s51 = sadd.s32 %s50, 1
      %p54 = scmp.eq.s32.totalorder %s16, 1
      %p55 = scmp.ne.s32.totalorder %s50, %s52
      %p56 = scmp.eq.s32.totalorder %s16, 0
      %p57 = por %p55, %p56
      %p58 = scmp.ne.s32.totalorder %s50, %s52
      %p59 = scmp.eq.s32.totalorder %s21, 1
      %p60 = por %p58, %p59
      %p61 = scmp.ne.s32.totalorder %s52, %s53
      %p62 = scmp.eq.s32.totalorder %s21, 0
      %p63 = por %p61, %p62
      %p64 = scmp.ne.s32.totalorder %s52, %s53
      %p65 = scmp.eq.s32.totalorder %s22, 1
      %p66 = por %p64, %p65
      %p68 = scmp.ne.s32.totalorder %s53, %s67
      %p69 = scmp.eq.s32.totalorder %s22, 0
      %p70 = por %p68, %p69
      %s72 = sadd.s32 %s71, 1
      %p75 = scmp.eq.s32.totalorder %s16, 1
      %p76 = scmp.ne.s32.totalorder %s71, %s73
      %p77 = scmp.eq.s32.totalorder %s16, 0
      %p78 = por %p76, %p77
      %p79 = scmp.ne.s32.totalorder %s71, %s73
      %p80 = scmp.eq.s32.totalorder %s21, 1
      %p81 = por %p79, %p80
      %p82 = scmp.ne.s32.totalorder %s73, %s74
      %p83 = scmp.eq.s32.totalorder %s21, 0
      %p84 = por %p82, %p83
      %p85 = scmp.ne.s32.totalorder %s73, %s74
      %p86 = scmp.eq.s32.totalorder %s22, 1
      %p87 = por %p85, %p86
      %p89 = scmp.ne.s32.totalorder %s74, %s88
      %p90 = scmp.eq.s32.totalorder %s22, 0
      %p91 = por %p89, %p90
      %s92 = ssub.s32 %s16, %s23
      %p93 = scmp.eq.s32.totalorder %s92, 0
      %s95 = sadd.s32 %s94, 1
      %s96 = scalar_select %p93, %s94, %s95
      %p99 = pneg %p93
      %p100 = scmp.eq.s32.totalorder %s16, 1
      %p101 = por %p99, %p100
      %p102 = scmp.ne.s32.totalorder %s94, %s97
      %p103 = scmp.eq.s32.totalorder %s16, 0
      %p104 = por %p102, %p103
      %p105 = scmp.ne.s32.totalorder %s94, %s97
      %p106 = scmp.eq.s32.totalorder %s21, 1
      %p107 = por %p105, %p106
      %p108 = scmp.ne.s32.totalorder %s97, %s98
      %p109 = scmp.eq.s32.totalorder %s21, 0
      %p110 = por %p108, %p109
      %p111 = scmp.ne.s32.totalorder %s97, %s98
      %p112 = scmp.eq.s32.totalorder %s22, 1
      %p113 = por %p111, %p112
      %p115 = scmp.ne.s32.totalorder %s98, %s114
      %p116 = scmp.eq.s32.totalorder %s22, 0
      %p117 = por %p115, %p116
      %p118 = scmp.le.s32.totalorder 1, %s16
      %p119 = scmp.lt.s32.totalorder %s16, 3
      %p120 = pnand %p118, %p119
      %p121 = pneg %p120
      // Predicated region
      $region9: #{tpu_custom_call.1} parent=5 // pred_check
        _
      $region10: #{tpu_custom_call.1} parent=5 // pred_check_branch
        %123 = sbr.rel (%p120) target = $region12
      $region11: #{tpu_custom_call.1} parent=5 // pred_region
        %s124 = ssub.s32 %s16, 1
        // Predicated region
        $region13: #{tpu_custom_call.1} parent=11 // pred_check
          %p125 = pneg %p63
        $region14: #{tpu_custom_call.1} parent=11 // pred_check_branch
          %127 = sbr.rel (%p125) target = $region16
        $region15: #{tpu_custom_call.1} parent=11 // pred_region
          %s129 = ssub.s32 384, 384
          %130 = vsyncadd [#allocation6], %s129
          %s132 = sshll.u32 [#allocation5], 4
          %s133 = int_to_ptr.vmem [resolvable:$true] %s132
          %135 = dma.hbm_to_vmem [thread:$0]  %s1, 384, %s133, [#allocation6]
        $region16: #{tpu_custom_call.1} parent=11 // pred_fallthru
          _
        // Predicated region
        $region17: #{tpu_custom_call.1} parent=11 // pred_check
          %p136 = pneg %p84
        $region18: #{tpu_custom_call.1} parent=11 // pred_check_branch
          %138 = sbr.rel (%p136) target = $region20
        $region19: #{tpu_custom_call.1} parent=11 // pred_region
          %s140 = ssub.s32 384, 384
          %141 = vsyncadd [#allocation6], %s140
          %s143 = sshll.u32 [#allocation7], 4
          %s144 = int_to_ptr.vmem [resolvable:$true] %s143
          %146 = dma.hbm_to_vmem [thread:$0]  %s2, 384, %s144, [#allocation6]
        $region20: #{tpu_custom_call.1} parent=11 // pred_fallthru
          _
      $region12: #{tpu_custom_call.1} parent=5 // pred_fallthru
        _
      %p147 = scmp.lt.s32.totalorder %s16, 2
      // Predicated region
      $region21: #{tpu_custom_call.1} parent=5 // pred_check
        %p148 = pneg %p147
      $region22: #{tpu_custom_call.1} parent=5 // pred_check_branch
        %150 = sbr.rel (%p148) target = $region24
      $region23: #{tpu_custom_call.1} parent=5 // pred_region
        // Predicated region
        $region25: #{tpu_custom_call.1} parent=23 // pred_check
          %p151 = pneg %p36
        $region26: #{tpu_custom_call.1} parent=23 // pred_check_branch
          %153 = sbr.rel (%p151) target = $region28
        $region27: #{tpu_custom_call.1} parent=23 // pred_region
          %s154 = sand.u32 %s26, 1
          %s155 = scalar_lea.sflag [#allocation3], %s154
          %s156 = sand.u32 %s26, 1
          %s157 = smul.addr %s156, 384
          %s158 = scalar_lea.vmem [#allocation2], %s157
          %s159 = smul.u32 2, %s16
          %s161 = ssub.s32 6144, 6144
          %162 = vsyncadd %s155, %s161
          %s163 = smul.addr %s159, 24
          %s164 = smul.addr %s163, 128
          %s165 = scalar_lea.hbm %s0, %s164
          %s166 = sshll.u32 %s158, 4
          %s167 = int_to_ptr.vmem [resolvable:$true] %s166
          %172 = dma.hbm_to_vmem [thread:$0]  %s165, 6144, %s167, %s155, 3072, 3072, 192
        $region28: #{tpu_custom_call.1} parent=23 // pred_fallthru
          _
      $region24: #{tpu_custom_call.1} parent=5 // pred_fallthru
        _
      %p173 = scmp.le.s32.totalorder 1, %s16
      %p174 = scmp.lt.s32.totalorder %s16, 3
      %p175 = pnand %p173, %p174
      %p176 = pneg %p175
      // Predicated region
      $region29: #{tpu_custom_call.1} parent=5 // pred_check
        _
      $region30: #{tpu_custom_call.1} parent=5 // pred_check_branch
        %178 = sbr.rel (%p175) target = $region32
      $region31: #{tpu_custom_call.1} parent=5 // pred_region
        %s179 = ssub.s32 %s16, 1
        %s180 = sand.u32 %s29, 1
        %s181 = scalar_lea.sflag [#allocation3], %s180
        %s182 = sand.u32 %s29, 1
        %s183 = smul.addr %s182, 384
        %s184 = scalar_lea.vmem [#allocation2], %s183
        // Predicated region
        $region33: #{tpu_custom_call.1} parent=31 // pred_check
          %p185 = pneg %p42
        $region34: #{tpu_custom_call.1} parent=31 // pred_check_branch
          %187 = sbr.rel (%p185) target = $region36
        $region35: #{tpu_custom_call.1} parent=31 // pred_region
          %188 = dma.done %s181, 6144
        $region36: #{tpu_custom_call.1} parent=31 // pred_fallthru
          _
        // Predicated region
        $region37: #{tpu_custom_call.1} parent=31 // pred_check
          %p189 = pneg %p63
        $region38: #{tpu_custom_call.1} parent=31 // pred_check_branch
          %191 = sbr.rel (%p189) target = $region40
        $region39: #{tpu_custom_call.1} parent=31 // pred_region
          %192 = dma.done [#allocation6], 384
        $region40: #{tpu_custom_call.1} parent=31 // pred_fallthru
          _
        // Predicated region
        $region41: #{tpu_custom_call.1} parent=31 // pred_check
          %p193 = pneg %p84
        $region42: #{tpu_custom_call.1} parent=31 // pred_check_branch
          %195 = sbr.rel (%p193) target = $region44
        $region43: #{tpu_custom_call.1} parent=31 // pred_region
          %196 = dma.done [#allocation6], 384
        $region44: #{tpu_custom_call.1} parent=31 // pred_fallthru
          _
        %s197 = sand.u32 %s29, 1
        %s198 = scalar_lea.sflag [#allocation3], %s197
        %s199 = sand.u32 %s29, 1
        %s200 = smul.addr %s199, 384
        %s201 = scalar_lea.vmem [#allocation2], %s200
        %p202 = pneg %p42
        %p203 = pneg %p39
        %p204 = pneg %p63
        %p205 = pneg %p60
        %p206 = pneg %p84
        %p207 = pneg %p81
        %p208 = pneg %p110
        %p209 = pneg %p107
        %s210 = sand.u32 %s97, 1
        %s211 = scalar_lea.sflag [#allocation4], %s210
        %s212 = sand.u32 %s97, 1
        %s213 = smul.addr %s212, 384
        %s214 = scalar_lea.vmem [#allocation8], %s213
        %s215 = smul.u32 2, %s21
        %s216 = smul.u32 2, %s21
        %v217 = vld [vmem:[%s184] sm:$0xff]
        %v218 = vld [vmem:[%s184 + $0x8] sm:$0xff]
        %v219 = vld [vmem:[%s184 + $0x10] sm:$0xff]
        %v220 = vld [vmem:[%s184 + $0x18] sm:$0xff]
        %v221 = vld [vmem:[%s184 + $0x20] sm:$0xff]
        %v222 = vld [vmem:[%s184 + $0x28] sm:$0xff]
        %v223 = vld [vmem:[%s184 + $0x30] sm:$0xff]
        %v224 = vld [vmem:[%s184 + $0x38] sm:$0xff]
        %v225 = vld [vmem:[%s184 + $0x40] sm:$0xff]
        %v226 = vld [vmem:[%s184 + $0x48] sm:$0xff]
        %v227 = vld [vmem:[%s184 + $0x50] sm:$0xff]
        %v228 = vld [vmem:[%s184 + $0x58] sm:$0xff]
        %v229 = vld [vmem:[%s184 + $0x60] sm:$0xff]
        %v230 = vld [vmem:[%s184 + $0x68] sm:$0xff]
        %v231 = vld [vmem:[%s184 + $0x70] sm:$0xff]
        %v232 = vld [vmem:[%s184 + $0x78] sm:$0xff]
        %v233 = vld [vmem:[%s184 + $0x80] sm:$0xff]
        %v234 = vld [vmem:[%s184 + $0x88] sm:$0xff]
        %v235 = vld [vmem:[%s184 + $0x90] sm:$0xff]
        %v236 = vld [vmem:[%s184 + $0x98] sm:$0xff]
        %v237 = vld [vmem:[%s184 + $0xa0] sm:$0xff]
        %v238 = vld [vmem:[%s184 + $0xa8] sm:$0xff]
        %v239 = vld [vmem:[%s184 + $0xb0] sm:$0xff]
        %v240 = vld [vmem:[%s184 + $0xb8] sm:$0xff]
        %v241 = vld [vmem:[%s184 + $0xc0] sm:$0xff]
        %v242 = vld [vmem:[%s184 + $0xc8] sm:$0xff]
        %v243 = vld [vmem:[%s184 + $0xd0] sm:$0xff]
        %v244 = vld [vmem:[%s184 + $0xd8] sm:$0xff]
        %v245 = vld [vmem:[%s184 + $0xe0] sm:$0xff]
        %v246 = vld [vmem:[%s184 + $0xe8] sm:$0xff]
        %v247 = vld [vmem:[%s184 + $0xf0] sm:$0xff]
        %v248 = vld [vmem:[%s184 + $0xf8] sm:$0xff]
        %v249 = vld [vmem:[%s184 + $0x100] sm:$0xff]
        %v250 = vld [vmem:[%s184 + $0x108] sm:$0xff]
        %v251 = vld [vmem:[%s184 + $0x110] sm:$0xff]
        %v252 = vld [vmem:[%s184 + $0x118] sm:$0xff]
        %v253 = vld [vmem:[%s184 + $0x120] sm:$0xff]
        %v254 = vld [vmem:[%s184 + $0x128] sm:$0xff]
        %v255 = vld [vmem:[%s184 + $0x130] sm:$0xff]
        %v256 = vld [vmem:[%s184 + $0x138] sm:$0xff]
        %v257 = vld [vmem:[%s184 + $0x140] sm:$0xff]
        %v258 = vld [vmem:[%s184 + $0x148] sm:$0xff]
        %v259 = vld [vmem:[%s184 + $0x150] sm:$0xff]
        %v260 = vld [vmem:[%s184 + $0x158] sm:$0xff]
        %v261 = vld [vmem:[%s184 + $0x160] sm:$0xff]
        %v262 = vld [vmem:[%s184 + $0x168] sm:$0xff]
        %v263 = vld [vmem:[%s184 + $0x170] sm:$0xff]
        %v264 = vld [vmem:[%s184 + $0x178] sm:$0xff]
        %v265 = vld [vmem:[#allocation5] sm:$0xff]
        %v266 = vld [vmem:[#allocation5 + $0x8] sm:$0xff]
        %v267 = vld [vmem:[#allocation5 + $0x10] sm:$0xff]
        %v271 = vlaneseq
        %v272 = vshrl.u32 %v271, 7
        %v273 = vsub.s32 0, %v272
        %v274 = vrot.slane %v265, %v273
        %v275 = vlaneseq
        %v276 = vshrl.u32 %v275, 7
        %v277 = vsub.s32 1, %v276
        %v278 = vrot.slane %v265, %v277
        %v279 = vlaneseq
        %v280 = vshrl.u32 %v279, 7
        %v281 = vsub.s32 2, %v280
        %v282 = vrot.slane %v265, %v281
        %v283 = vlaneseq
        %v284 = vshrl.u32 %v283, 7
        %v285 = vsub.s32 3, %v284
        %v286 = vrot.slane %v265, %v285
        %v287 = vlaneseq
        %v288 = vshrl.u32 %v287, 7
        %v289 = vsub.s32 4, %v288
        %v290 = vrot.slane %v265, %v289
        %v291 = vlaneseq
        %v292 = vshrl.u32 %v291, 7
        %v293 = vsub.s32 5, %v292
        %v294 = vrot.slane %v265, %v293
        %v295 = vlaneseq
        %v296 = vshrl.u32 %v295, 7
        %v297 = vsub.s32 6, %v296
        %v298 = vrot.slane %v265, %v297
        %v299 = vlaneseq
        %v300 = vshrl.u32 %v299, 7
        %v301 = vsub.s32 7, %v300
        %v302 = vrot.slane %v265, %v301
        %v303 = vlaneseq
        %v304 = vshrl.u32 %v303, 7
        %v305 = vsub.s32 0, %v304
        %v306 = vrot.slane %v266, %v305
        %v307 = vlaneseq
        %v308 = vshrl.u32 %v307, 7
        %v309 = vsub.s32 1, %v308
        %v310 = vrot.slane %v266, %v309
        %v311 = vlaneseq
        %v312 = vshrl.u32 %v311, 7
        %v313 = vsub.s32 2, %v312
        %v314 = vrot.slane %v266, %v313
        %v315 = vlaneseq
        %v316 = vshrl.u32 %v315, 7
        %v317 = vsub.s32 3, %v316
        %v318 = vrot.slane %v266, %v317
        %v319 = vlaneseq
        %v320 = vshrl.u32 %v319, 7
        %v321 = vsub.s32 4, %v320
        %v322 = vrot.slane %v266, %v321
        %v323 = vlaneseq
        %v324 = vshrl.u32 %v323, 7
        %v325 = vsub.s32 5, %v324
        %v326 = vrot.slane %v266, %v325
        %v327 = vlaneseq
        %v328 = vshrl.u32 %v327, 7
        %v329 = vsub.s32 6, %v328
        %v330 = vrot.slane %v266, %v329
        %v331 = vlaneseq
        %v332 = vshrl.u32 %v331, 7
        %v333 = vsub.s32 7, %v332
        %v334 = vrot.slane %v266, %v333
        %v335 = vlaneseq
        %v336 = vshrl.u32 %v335, 7
        %v337 = vsub.s32 0, %v336
        %v338 = vrot.slane %v267, %v337
        %v339 = vlaneseq
        %v340 = vshrl.u32 %v339, 7
        %v341 = vsub.s32 1, %v340
        %v342 = vrot.slane %v267, %v341
        %v343 = vlaneseq
        %v344 = vshrl.u32 %v343, 7
        %v345 = vsub.s32 2, %v344
        %v346 = vrot.slane %v267, %v345
        %v347 = vlaneseq
        %v348 = vshrl.u32 %v347, 7
        %v349 = vsub.s32 3, %v348
        %v350 = vrot.slane %v267, %v349
        %v351 = vlaneseq
        %v352 = vshrl.u32 %v351, 7
        %v353 = vsub.s32 4, %v352
        %v354 = vrot.slane %v267, %v353
        %v355 = vlaneseq
        %v356 = vshrl.u32 %v355, 7
        %v357 = vsub.s32 5, %v356
        %v358 = vrot.slane %v267, %v357
        %v359 = vlaneseq
        %v360 = vshrl.u32 %v359, 7
        %v361 = vsub.s32 6, %v360
        %v362 = vrot.slane %v267, %v361
        %v363 = vlaneseq
        %v364 = vshrl.u32 %v363, 7
        %v365 = vsub.s32 7, %v364
        %v366 = vrot.slane %v267, %v365
        %v391 = vmul.f32 %v217, %v274
        %v392 = vmul.f32 %v218, %v278
        %v393 = vmul.f32 %v219, %v282
        %v394 = vmul.f32 %v220, %v286
        %v395 = vmul.f32 %v221, %v290
        %v396 = vmul.f32 %v222, %v294
        %v397 = vmul.f32 %v223, %v298
        %v398 = vmul.f32 %v224, %v302
        %v399 = vmul.f32 %v225, %v306
        %v400 = vmul.f32 %v226, %v310
        %v401 = vmul.f32 %v227, %v314
        %v402 = vmul.f32 %v228, %v318
        %v403 = vmul.f32 %v229, %v322
        %v404 = vmul.f32 %v230, %v326
        %v405 = vmul.f32 %v231, %v330
        %v406 = vmul.f32 %v232, %v334
        %v407 = vmul.f32 %v233, %v338
        %v408 = vmul.f32 %v234, %v342
        %v409 = vmul.f32 %v235, %v346
        %v410 = vmul.f32 %v236, %v350
        %v411 = vmul.f32 %v237, %v354
        %v412 = vmul.f32 %v238, %v358
        %v413 = vmul.f32 %v239, %v362
        %v414 = vmul.f32 %v240, %v366
        %v415 = vmul.f32 %v241, %v274
        %v416 = vmul.f32 %v242, %v278
        %v417 = vmul.f32 %v243, %v282
        %v418 = vmul.f32 %v244, %v286
        %v419 = vmul.f32 %v245, %v290
        %v420 = vmul.f32 %v246, %v294
        %v421 = vmul.f32 %v247, %v298
        %v422 = vmul.f32 %v248, %v302
        %v423 = vmul.f32 %v249, %v306
        %v424 = vmul.f32 %v250, %v310
        %v425 = vmul.f32 %v251, %v314
        %v426 = vmul.f32 %v252, %v318
        %v427 = vmul.f32 %v253, %v322
        %v428 = vmul.f32 %v254, %v326
        %v429 = vmul.f32 %v255, %v330
        %v430 = vmul.f32 %v256, %v334
        %v431 = vmul.f32 %v257, %v338
        %v432 = vmul.f32 %v258, %v342
        %v433 = vmul.f32 %v259, %v346
        %v434 = vmul.f32 %v260, %v350
        %v435 = vmul.f32 %v261, %v354
        %v436 = vmul.f32 %v262, %v358
        %v437 = vmul.f32 %v263, %v362
        %v438 = vmul.f32 %v264, %v366
        %v439 = vld [vmem:[#allocation7] sm:$0xff]
        %v440 = vld [vmem:[#allocation7 + $0x8] sm:$0xff]
        %v441 = vld [vmem:[#allocation7 + $0x10] sm:$0xff]
        %v445 = vlaneseq
        %v446 = vshrl.u32 %v445, 7
        %v447 = vsub.s32 0, %v446
        %v448 = vrot.slane %v439, %v447
        %v449 = vlaneseq
        %v450 = vshrl.u32 %v449, 7
        %v451 = vsub.s32 1, %v450
        %v452 = vrot.slane %v439, %v451
        %v453 = vlaneseq
        %v454 = vshrl.u32 %v453, 7
        %v455 = vsub.s32 2, %v454
        %v456 = vrot.slane %v439, %v455
        %v457 = vlaneseq
        %v458 = vshrl.u32 %v457, 7
        %v459 = vsub.s32 3, %v458
        %v460 = vrot.slane %v439, %v459
        %v461 = vlaneseq
        %v462 = vshrl.u32 %v461, 7
        %v463 = vsub.s32 4, %v462
        %v464 = vrot.slane %v439, %v463
        %v465 = vlaneseq
        %v466 = vshrl.u32 %v465, 7
        %v467 = vsub.s32 5, %v466
        %v468 = vrot.slane %v439, %v467
        %v469 = vlaneseq
        %v470 = vshrl.u32 %v469, 7
        %v471 = vsub.s32 6, %v470
        %v472 = vrot.slane %v439, %v471
        %v473 = vlaneseq
        %v474 = vshrl.u32 %v473, 7
        %v475 = vsub.s32 7, %v474
        %v476 = vrot.slane %v439, %v475
        %v477 = vlaneseq
        %v478 = vshrl.u32 %v477, 7
        %v479 = vsub.s32 0, %v478
        %v480 = vrot.slane %v440, %v479
        %v481 = vlaneseq
        %v482 = vshrl.u32 %v481, 7
        %v483 = vsub.s32 1, %v482
        %v484 = vrot.slane %v440, %v483
        %v485 = vlaneseq
        %v486 = vshrl.u32 %v485, 7
        %v487 = vsub.s32 2, %v486
        %v488 = vrot.slane %v440, %v487
        %v489 = vlaneseq
        %v490 = vshrl.u32 %v489, 7
        %v491 = vsub.s32 3, %v490
        %v492 = vrot.slane %v440, %v491
        %v493 = vlaneseq
        %v494 = vshrl.u32 %v493, 7
        %v495 = vsub.s32 4, %v494
        %v496 = vrot.slane %v440, %v495
        %v497 = vlaneseq
        %v498 = vshrl.u32 %v497, 7
        %v499 = vsub.s32 5, %v498
        %v500 = vrot.slane %v440, %v499
        %v501 = vlaneseq
        %v502 = vshrl.u32 %v501, 7
        %v503 = vsub.s32 6, %v502
        %v504 = vrot.slane %v440, %v503
        %v505 = vlaneseq
        %v506 = vshrl.u32 %v505, 7
        %v507 = vsub.s32 7, %v506
        %v508 = vrot.slane %v440, %v507
        %v509 = vlaneseq
        %v510 = vshrl.u32 %v509, 7
        %v511 = vsub.s32 0, %v510
        %v512 = vrot.slane %v441, %v511
        %v513 = vlaneseq
        %v514 = vshrl.u32 %v513, 7
        %v515 = vsub.s32 1, %v514
        %v516 = vrot.slane %v441, %v515
        %v517 = vlaneseq
        %v518 = vshrl.u32 %v517, 7
        %v519 = vsub.s32 2, %v518
        %v520 = vrot.slane %v441, %v519
        %v521 = vlaneseq
        %v522 = vshrl.u32 %v521, 7
        %v523 = vsub.s32 3, %v522
        %v524 = vrot.slane %v441, %v523
        %v525 = vlaneseq
        %v526 = vshrl.u32 %v525, 7
        %v527 = vsub.s32 4, %v526
        %v528 = vrot.slane %v441, %v527
        %v529 = vlaneseq
        %v530 = vshrl.u32 %v529, 7
        %v531 = vsub.s32 5, %v530
        %v532 = vrot.slane %v441, %v531
        %v533 = vlaneseq
        %v534 = vshrl.u32 %v533, 7
        %v535 = vsub.s32 6, %v534
        %v536 = vrot.slane %v441, %v535
        %v537 = vlaneseq
        %v538 = vshrl.u32 %v537, 7
        %v539 = vsub.s32 7, %v538
        %v540 = vrot.slane %v441, %v539
        %v565 = vadd.f32 %v391, %v448
        %v566 = vadd.f32 %v392, %v452
        %v567 = vadd.f32 %v393, %v456
        %v568 = vadd.f32 %v394, %v460
        %v569 = vadd.f32 %v395, %v464
        %v570 = vadd.f32 %v396, %v468
        %v571 = vadd.f32 %v397, %v472
        %v572 = vadd.f32 %v398, %v476
        %v573 = vadd.f32 %v399, %v480
        %v574 = vadd.f32 %v400, %v484
        %v575 = vadd.f32 %v401, %v488
        %v576 = vadd.f32 %v402, %v492
        %v577 = vadd.f32 %v403, %v496
        %v578 = vadd.f32 %v404, %v500
        %v579 = vadd.f32 %v405, %v504
        %v580 = vadd.f32 %v406, %v508
        %v581 = vadd.f32 %v407, %v512
        %v582 = vadd.f32 %v408, %v516
        %v583 = vadd.f32 %v409, %v520
        %v584 = vadd.f32 %v410, %v524
        %v585 = vadd.f32 %v411, %v528
        %v586 = vadd.f32 %v412, %v532
        %v587 = vadd.f32 %v413, %v536
        %v588 = vadd.f32 %v414, %v540
        %v589 = vadd.f32 %v415, %v448
        %v590 = vadd.f32 %v416, %v452
        %v591 = vadd.f32 %v417, %v456
        %v592 = vadd.f32 %v418, %v460
        %v593 = vadd.f32 %v419, %v464
        %v594 = vadd.f32 %v420, %v468
        %v595 = vadd.f32 %v421, %v472
        %v596 = vadd.f32 %v422, %v476
        %v597 = vadd.f32 %v423, %v480
        %v598 = vadd.f32 %v424, %v484
        %v599 = vadd.f32 %v425, %v488
        %v600 = vadd.f32 %v426, %v492
        %v601 = vadd.f32 %v427, %v496
        %v602 = vadd.f32 %v428, %v500
        %v603 = vadd.f32 %v429, %v504
        %v604 = vadd.f32 %v430, %v508
        %v605 = vadd.f32 %v431, %v512
        %v606 = vadd.f32 %v432, %v516
        %v607 = vadd.f32 %v433, %v520
        %v608 = vadd.f32 %v434, %v524
        %v609 = vadd.f32 %v435, %v528
        %v610 = vadd.f32 %v436, %v532
        %v611 = vadd.f32 %v437, %v536
        %v612 = vadd.f32 %v438, %v540
        %613 = vst [vmem:[%s214] sm:$0xff] %v565
        %614 = vst [vmem:[%s214 + $0x8] sm:$0xff] %v566
        %615 = vst [vmem:[%s214 + $0x10] sm:$0xff] %v567
        %616 = vst [vmem:[%s214 + $0x18] sm:$0xff] %v568
        %617 = vst [vmem:[%s214 + $0x20] sm:$0xff] %v569
        %618 = vst [vmem:[%s214 + $0x28] sm:$0xff] %v570
        %619 = vst [vmem:[%s214 + $0x30] sm:$0xff] %v571
        %620 = vst [vmem:[%s214 + $0x38] sm:$0xff] %v572
        %621 = vst [vmem:[%s214 + $0x40] sm:$0xff] %v573
        %622 = vst [vmem:[%s214 + $0x48] sm:$0xff] %v574
        %623 = vst [vmem:[%s214 + $0x50] sm:$0xff] %v575
        %624 = vst [vmem:[%s214 + $0x58] sm:$0xff] %v576
        %625 = vst [vmem:[%s214 + $0x60] sm:$0xff] %v577
        %626 = vst [vmem:[%s214 + $0x68] sm:$0xff] %v578
        %627 = vst [vmem:[%s214 + $0x70] sm:$0xff] %v579
        %628 = vst [vmem:[%s214 + $0x78] sm:$0xff] %v580
        %629 = vst [vmem:[%s214 + $0x80] sm:$0xff] %v581
        %630 = vst [vmem:[%s214 + $0x88] sm:$0xff] %v582
        %631 = vst [vmem:[%s214 + $0x90] sm:$0xff] %v583
        %632 = vst [vmem:[%s214 + $0x98] sm:$0xff] %v584
        %633 = vst [vmem:[%s214 + $0xa0] sm:$0xff] %v585
        %634 = vst [vmem:[%s214 + $0xa8] sm:$0xff] %v586
        %635 = vst [vmem:[%s214 + $0xb0] sm:$0xff] %v587
        %636 = vst [vmem:[%s214 + $0xb8] sm:$0xff] %v588
        %637 = vst [vmem:[%s214 + $0xc0] sm:$0xff] %v589
        %638 = vst [vmem:[%s214 + $0xc8] sm:$0xff] %v590
        %639 = vst [vmem:[%s214 + $0xd0] sm:$0xff] %v591
        %640 = vst [vmem:[%s214 + $0xd8] sm:$0xff] %v592
        %641 = vst [vmem:[%s214 + $0xe0] sm:$0xff] %v593
        %642 = vst [vmem:[%s214 + $0xe8] sm:$0xff] %v594
        %643 = vst [vmem:[%s214 + $0xf0] sm:$0xff] %v595
        %644 = vst [vmem:[%s214 + $0xf8] sm:$0xff] %v596
        %645 = vst [vmem:[%s214 + $0x100] sm:$0xff] %v597
        %646 = vst [vmem:[%s214 + $0x108] sm:$0xff] %v598
        %647 = vst [vmem:[%s214 + $0x110] sm:$0xff] %v599
        %648 = vst [vmem:[%s214 + $0x118] sm:$0xff] %v600
        %649 = vst [vmem:[%s214 + $0x120] sm:$0xff] %v601
        %650 = vst [vmem:[%s214 + $0x128] sm:$0xff] %v602
        %651 = vst [vmem:[%s214 + $0x130] sm:$0xff] %v603
        %652 = vst [vmem:[%s214 + $0x138] sm:$0xff] %v604
        %653 = vst [vmem:[%s214 + $0x140] sm:$0xff] %v605
        %654 = vst [vmem:[%s214 + $0x148] sm:$0xff] %v606
        %655 = vst [vmem:[%s214 + $0x150] sm:$0xff] %v607
        %656 = vst [vmem:[%s214 + $0x158] sm:$0xff] %v608
        %657 = vst [vmem:[%s214 + $0x160] sm:$0xff] %v609
        %658 = vst [vmem:[%s214 + $0x168] sm:$0xff] %v610
        %659 = vst [vmem:[%s214 + $0x170] sm:$0xff] %v611
        %660 = vst [vmem:[%s214 + $0x178] sm:$0xff] %v612
        %s661 = sand.u32 %s97, 1
        %s662 = scalar_lea.sflag [#allocation4], %s661
        %s663 = sand.u32 %s97, 1
        %s664 = smul.addr %s663, 384
        %s665 = scalar_lea.vmem [#allocation8], %s664
        // Predicated region
        $region45: #{tpu_custom_call.1} parent=31 // pred_check
          %p666 = pneg %p107
        $region46: #{tpu_custom_call.1} parent=31 // pred_check_branch
          %668 = sbr.rel (%p666) target = $region48
        $region47: #{tpu_custom_call.1} parent=31 // pred_region
          %s669 = smul.u32 2, %s21
          %s671 = ssub.s32 6144, 6144
          %672 = vsyncadd %s662, %s671
          %s673 = smul.addr %s669, 24
          %s674 = smul.addr %s673, 128
          %s675 = scalar_lea.hbm %s3, %s674
          %s676 = sshll.u32 %s665, 4
          %s677 = int_to_ptr.vmem [resolvable:$true] %s676
          %682 = dma.vmem_to_hbm [thread:$0]  %s677, 6144, %s675, %s662, 3072, 3072, 192
        $region48: #{tpu_custom_call.1} parent=31 // pred_fallthru
          _
      $region32: #{tpu_custom_call.1} parent=5 // pred_fallthru
        _
      %p683 = scmp.le.s32.totalorder 2, %s16
      // Predicated region
      $region49: #{tpu_custom_call.1} parent=5 // pred_check
        %p684 = pneg %p683
      $region50: #{tpu_custom_call.1} parent=5 // pred_check_branch
        %686 = sbr.rel (%p684) target = $region52
      $region51: #{tpu_custom_call.1} parent=5 // pred_region
        %s687 = ssub.s32 %s16, 2
        // Predicated region
        $region53: #{tpu_custom_call.1} parent=51 // pred_check
          %p688 = pneg %p113
        $region54: #{tpu_custom_call.1} parent=51 // pred_check_branch
          %690 = sbr.rel (%p688) target = $region56
        $region55: #{tpu_custom_call.1} parent=51 // pred_region
          %s691 = sand.u32 %s98, 1
          %s692 = scalar_lea.sflag [#allocation4], %s691
          %s693 = sand.u32 %s98, 1
          %s694 = smul.addr %s693, 384
          %s695 = scalar_lea.vmem [#allocation8], %s694
          %696 = dma.done %s692, 6144
        $region56: #{tpu_custom_call.1} parent=51 // pred_fallthru
          _
      $region52: #{tpu_custom_call.1} parent=5 // pred_fallthru
        _
    $region6: #{tpu_custom_call.1} parent=1 // loop_footer
      %s20 = sadd.s32 1, %s16
    $region7: #{tpu_custom_call.1} parent=1 // loop_footer_branch
      %15 = sbr.rel target = $region3
    $region8: #{tpu_custom_call.1} parent=1 // loop_exit
      _
    %697 = vsyncpa [#allocation3], 1
    %s698 = scalar_lea.sflag [#allocation3], 1
    %699 = vsyncpa %s698, 1
    %700 = vsyncpa [#allocation6], 1
    %701 = vsyncpa [#allocation4], 1
    %s702 = scalar_lea.sflag [#allocation4], 1
    %703 = vsyncpa %s702, 1

</llo_original>
